<compile_context>
chip_gen: v7x
topology: tpu7x:2x2x1
jax: 0.10.0
libtpu: 0.0.40
codegen_flags: <defaults>
</compile_context>

<pallas_src>
import functools
import math

import jax
import jax.numpy as jnp
from jax.experimental import pallas as pl
from jax.experimental.pallas import tpu as pltpu

LANES = 128
TARGET_BLOCK_BYTES = 8 * 1024 * 1024   # per input, per pipeline buffer
VMEM_LIMIT_BYTES = 48 * 1024 * 1024    # fits v7x (64 MiB phys), > v5e default


def _sublane_pack(dtype):
    """Sublane packing for the dtype: 8 (f32), 16 (bf16), 32 (int8/bool)."""
    itemsize = dtype.itemsize
    return 8 * max(1, 4 // max(1, itemsize))


def _dice_kernel(pred_ref, target_ref, pt_ref, ps_ref, *,
                 rows, row_block, lanes):
    """Per-block per-lane partial sums.

    pt = sum(pred * target) reduced over the sublane-major axis to (8, lanes)
    ps = sum(pred + target) reduced likewise.
    """

    def compute(masked):
        p = pred_ref[...].astype(jnp.float32)
        t = target_ref[...].astype(jnp.float32)

        # NOTE: the original module computes torch.sigmoid(pred) into
        # `pred_probs` but never uses it, so no sigmoid is applied here
        # (faithful to source).

        if masked:  # only traced for the last (possibly ragged) block
            row_id = (pl.program_id(0) * row_block
                      + jax.lax.broadcasted_iota(jnp.int32,
                                                 (row_block, lanes), 0))
            valid = row_id < rows
            p = jnp.where(valid, p, 0.0)
            t = jnp.where(valid, t, 0.0)

        if row_block % 8 == 0:
            # Reduce the major axis with pure VPU vreg adds into (8, lanes);
            # the sublane/lane reduction is deferred to the tiny wrapper sum.
            # TODO(synk): for bf16/int8 inputs on v7x an MXU row-reduction
            # (ones(1, row_block) @ x) could offload these adds if a bundle
            # dump shows the VALU slot saturating.
            p3 = p.reshape(row_block // 8, 8, lanes)
            t3 = t.reshape(row_block // 8, 8, lanes)
            pt_ref[...] = jnp.sum(p3 * t3, axis=0)
            ps_ref[...] = jnp.sum(p3 + t3, axis=0)
        else:
            # Tiny-input fallback (single block, row count not a multiple of 8).
            pt_ref[...] = jnp.sum(p * t, axis=0, keepdims=True)
            ps_ref[...] = jnp.sum(p + t, axis=0, keepdims=True)

    if rows % row_block:  # static: only the last block can be ragged
        i = pl.program_id(0)
        last = pl.num_programs(0) - 1

        @pl.when(i != last)
        def _():
            compute(False)

        @pl.when(i == last)
        def _():
            compute(True)
    else:
        compute(False)


def dice_loss(pred, target, smooth=0.01):
    """Negative dice coefficient, matching DiceLoss.forward."""
    total = pred.size
    assert total == target.size

    # Flatten in native dtype (cast to f32 happens in-kernel on the VPU).
    p_flat = pred.reshape(-1)
    t_flat = target.reshape(-1)

    main = (total // LANES) * LANES
    tail = total - main

    tail_pt = jnp.float32(0.0)
    tail_ps = jnp.float32(0.0)
    if tail:
        # <128-element ragged tail: summed directly in the wrapper (no
        # full-array jnp.pad pass).
        # TODO(synk): the prefix slice below may still materialize one copy of
        # `main` elements for ragged totals; common CNN shapes (total % 128
        # == 0) take the fully copy-free path.
        pt_tail = p_flat[main:].astype(jnp.float32)
        tt_tail = t_flat[main:].astype(jnp.float32)
        tail_pt = jnp.sum(pt_tail * tt_tail)
        tail_ps = jnp.sum(pt_tail) + jnp.sum(tt_tail)
        p_flat = p_flat[:main]
        t_flat = t_flat[:main]

    if main == 0:
        intersect = tail_pt
        sum_p_plus_t = tail_ps
    else:
        rows = main // LANES
        p2 = p_flat.reshape(rows, LANES)
        t2 = t_flat.reshape(rows, LANES)

        p_item = p2.dtype.itemsize
        t_item = t2.dtype.itemsize
        pack = math.lcm(_sublane_pack(p2.dtype), _sublane_pack(t2.dtype))

        if rows <= pack:
            row_block = rows                      # single full block
        else:
            # Byte-targeted block, kept a multiple of the sublane pack and
            # capped so there are >= 2 grid steps (v7x megacore sharding).
            target_rows = max(
                pack,
                (TARGET_BLOCK_BYTES // (LANES * max(p_item, t_item)))
                // pack * pack)
            half_rows = pack * pl.cdiv(pl.cdiv(rows, 2), pack)
            row_block = min(target_rows, half_rows)

        num_blocks = pl.cdiv(rows, row_block)
        sub = 8 if row_block % 8 == 0 else 1

        cost = pl.CostEstimate(
            flops=3 * main,
            transcendentals=0,
            bytes_accessed=main * (p_item + t_item)
            + 2 * num_blocks * sub * LANES * 4)

        pt_partial, ps_partial = pl.pallas_call(
            functools.partial(_dice_kernel, rows=rows, row_block=row_block,
                              lanes=LANES),
            out_shape=(
                jax.ShapeDtypeStruct((num_blocks * sub, LANES), jnp.float32),
                jax.ShapeDtypeStruct((num_blocks * sub, LANES), jnp.float32),
            ),
            grid_spec=pltpu.PrefetchScalarGridSpec(
                num_scalar_prefetch=0,
                grid=(num_blocks,),
                in_specs=[
                    pl.BlockSpec((row_block, LANES), lambda i: (i, 0)),
                    pl.BlockSpec((row_block, LANES), lambda i: (i, 0)),
                ],
                out_specs=(
                    pl.BlockSpec((sub, LANES), lambda i: (i, 0)),
                    pl.BlockSpec((sub, LANES), lambda i: (i, 0)),
                ),
            ),
            compiler_params=pltpu.CompilerParams(
                dimension_semantics=("parallel",),
                vmem_limit_bytes=VMEM_LIMIT_BYTES),
            cost_estimate=cost,
        )(p2, t2)

        # Tiny final reduction (combines per-block / per-core partials).
        intersect = jnp.sum(pt_partial) + tail_pt
        sum_p_plus_t = jnp.sum(ps_partial) + tail_ps

    num = 2.0 * intersect + smooth
    denom = sum_p_plus_t + smooth
    return -(num / denom)


def _reference(pred, target, smooth=0.01):
    p = pred.reshape(-1).astype(jnp.float32)
    t = target.reshape(-1).astype(jnp.float32)
    intersect = jnp.sum(t * p)
    num = 2.0 * intersect + smooth
    denom = jnp.sum(p) + jnp.sum(t) + smooth
    return -(num / denom)


if __name__ == "__main__":
    key = jax.random.PRNGKey(0)
    k1, k2 = jax.random.split(key)
    # NCHW logits and binary target mask
    pred = jax.random.normal(k1, (2, 4, 16, 16), dtype=jnp.float32)
    target = (jax.random.uniform(k2, (2, 4, 16, 16)) > 0.5).astype(jnp.float32)

    loss = jax.block_until_ready(dice_loss(pred, target))
    ref = jax.block_until_ready(_reference(pred, target))

    assert jnp.allclose(loss, ref, rtol=1e-5, atol=1e-5), (loss, ref)
    print("KERNEL_OK")
</pallas_src>

<mosaic_0001>
module attributes {stable_mosaic.version = 11 : i64} {
  func.func @_dice_kernel(%arg0: i32, %arg1: memref<8x128xf32, #tpu.memory_space<vmem>>, %arg2: memref<8x128xf32, #tpu.memory_space<vmem>>, %arg3: memref<8x128xf32, #tpu.memory_space<vmem>>, %arg4: memref<8x128xf32, #tpu.memory_space<vmem>>) attributes {dimension_semantics = [#tpu.dimension_semantics<parallel>], iteration_bounds = array<i64: 2>, scalar_prefetch = 0 : i64, scratch_operands = 0 : i64, tpu.core_type = #tpu.core_type<tc>, window_params = [{transform_indices = @transform_0, window_bounds = array<i64: 8, 128>}, {transform_indices = @transform_1, window_bounds = array<i64: 8, 128>}, {transform_indices = @transform_2, window_bounds = array<i64: 8, 128>}, {transform_indices = @transform_3, window_bounds = array<i64: 8, 128>}]} {
    %c0 = arith.constant 0 : index
    %c0_0 = arith.constant 0 : index
    %0 = vector.load %arg1[%c0, %c0_0] : memref<8x128xf32, #tpu.memory_space<vmem>>, vector<8x128xf32>
    %c0_1 = arith.constant 0 : index
    %c0_2 = arith.constant 0 : index
    %1 = vector.load %arg2[%c0_1, %c0_2] : memref<8x128xf32, #tpu.memory_space<vmem>>, vector<8x128xf32>
    %2 = vector.shape_cast %0 : vector<8x128xf32> to vector<1x8x128xf32>
    %3 = vector.shape_cast %1 : vector<8x128xf32> to vector<1x8x128xf32>
    %4 = arith.mulf %2, %3 : vector<1x8x128xf32>
    %cst = arith.constant dense<0.000000e+00> : vector<8x128xf32>
    %5 = vector.multi_reduction <add>, %4, %cst [0] : vector<1x8x128xf32> to vector<8x128xf32>
    %c0_3 = arith.constant 0 : index
    %c0_4 = arith.constant 0 : index
    %6 = vector.load %arg3[%c0_3, %c0_4] : memref<8x128xf32, #tpu.memory_space<vmem>>, vector<8x128xf32>
    tpu.vector_store %arg3[%c0_3, %c0_4], %5 {strides = array<i32>} : memref<8x128xf32, #tpu.memory_space<vmem>>, vector<8x128xf32>,
    %7 = arith.addf %2, %3 : vector<1x8x128xf32>
    %cst_5 = arith.constant dense<0.000000e+00> : vector<8x128xf32>
    %8 = vector.multi_reduction <add>, %7, %cst_5 [0] : vector<1x8x128xf32> to vector<8x128xf32>
    %c0_6 = arith.constant 0 : index
    %c0_7 = arith.constant 0 : index
    %9 = vector.load %arg4[%c0_6, %c0_7] : memref<8x128xf32, #tpu.memory_space<vmem>>, vector<8x128xf32>
    tpu.vector_store %arg4[%c0_6, %c0_7], %8 {strides = array<i32>} : memref<8x128xf32, #tpu.memory_space<vmem>>, vector<8x128xf32>,
    return
  }
  func.func @transform_0(%arg0: i32) -> (i32, i32) {
    %c0_i32 = arith.constant 0 : i32
    %c0_i32_0 = arith.constant 0 : i32
    return %arg0, %c0_i32 : i32, i32
  }
  func.func @transform_1(%arg0: i32) -> (i32, i32) {
    %c0_i32 = arith.constant 0 : i32
    %c0_i32_0 = arith.constant 0 : i32
    return %arg0, %c0_i32 : i32, i32
  }
  func.func @transform_2(%arg0: i32) -> (i32, i32) {
    %c0_i32 = arith.constant 0 : i32
    %c0_i32_0 = arith.constant 0 : i32
    return %arg0, %c0_i32 : i32, i32
  }
  func.func @transform_3(%arg0: i32) -> (i32, i32) {
    %c0_i32 = arith.constant 0 : i32
    %c0_i32_0 = arith.constant 0 : i32
    return %arg0, %c0_i32 : i32, i32
  }
}

</mosaic_0001>

<llo_original>
// kernel: tpu_custom_call.1
$region0: #{tpu_custom_call.1}
  #allocation0 [shape = 'u32[]', space=smem, size = 0x4, offset = 0x4, fixed_abs, tag = 'smem constant byte address 0x4 - core index']
  #allocation1 [shape = 'u32[144,128]{1,0:T(1,128)}', space=vmem, size = 0x12000, scoped, tag = 'internal scratch']
  %s0 = inlined_call_operand.hbm [shape: f32[16,128], index: 0, kind: input, shape index: {}]
  %s1 = inlined_call_operand.hbm [shape: f32[16,128], index: 1, kind: input, shape index: {}]
  %s2 = inlined_call_operand.hbm [shape: f32[16,128], index: 2, kind: output, shape index: {0}]
  %s3 = inlined_call_operand.hbm [shape: f32[16,128], index: 3, kind: output, shape index: {1}]
  %4 = xla_tuple %s2, %s3
  %s5 = sld [smem:[#allocation0]]
  $region57: #{tpu_custom_call.1} parent=0
    _
  %s7 = ssub.s32 1, %s5
  %s8 = scalar_select 0, %s7, %s5
  $region1: #{tpu_custom_call.1} parent=0
    #allocation2 [shape = 'u8[8192]{0}', space=vmem, size = 0x2000, scoped, tag = 'input window, operand 0']
    #allocation3 [shape = 's32[2]{0}', space=sflag, size = 0x8, scoped, tag = 'scoped memory for tpu_custom_call.1']
    #allocation4 [shape = 's32[2]{0}', space=sflag, size = 0x8, scoped, tag = 'scoped memory for tpu_custom_call.1']
    #allocation5 [shape = 'u8[8192]{0}', space=vmem, size = 0x2000, scoped, tag = 'input window, operand 1']
    #allocation6 [shape = 's32[2]{0}', space=sflag, size = 0x8, scoped, tag = 'scoped memory for tpu_custom_call.1']
    #allocation7 [shape = 'u8[8192]{0}', space=vmem, size = 0x2000, scoped, tag = 'output window, operand 0']
    #allocation8 [shape = 'u8[8192]{0}', space=vmem, size = 0x2000, scoped, tag = 'output window, operand 1']
    #allocation9 [shape = 's32[2]{0}', space=sflag, size = 0x8, scoped, tag = 'scoped memory for tpu_custom_call.1']
    %9 = vsyncpa [#allocation3], 0
    %s10 = scalar_lea.sflag [#allocation3], 1
    %11 = vsyncpa %s10, 0
    %12 = vsyncpa [#allocation6], 0
    %s13 = scalar_lea.sflag [#allocation6], 1
    %14 = vsyncpa %s13, 0
    %15 = vsyncpa [#allocation4], 0
    %s16 = scalar_lea.sflag [#allocation4], 1
    %17 = vsyncpa %s16, 0
    %18 = vsyncpa [#allocation9], 0
    %s19 = scalar_lea.sflag [#allocation9], 1
    %20 = vsyncpa %s19, 0
    loop: start=0, step=1, limit=4
    $region2: #{tpu_custom_call.1} parent=1 // loop_pre_header
      _
    $region3: #{tpu_custom_call.1} parent=1 // loop_header
      %s22 = sphi 0, %s26
      %p23 = scmp.ge.s32.totalorder %s22, 4
      %s32 = sphi 0, %s34
      %s35 = sphi 0, %s32
      %s36 = sphi 0, %s35
      %s52 = sphi 0, %s36
      %s58 = sphi 0, %s60
      %s61 = sphi 0, %s58
      %s62 = sphi 0, %s61
      %s78 = sphi 0, %s62
      %s84 = sphi 0, %s86
      %s87 = sphi 0, %s84
      %s88 = sphi 0, %s87
      %s104 = sphi 0, %s88
      %s110 = sphi 0, %s112
      %s113 = sphi 0, %s110
      %s114 = sphi 0, %s113
      %s130 = sphi 0, %s114
    $region4: #{tpu_custom_call.1} parent=1 // loop_header_branch
      %25 = sbr.rel (%p23) target = $region8
    $region5: #{tpu_custom_call.1} parent=1 // loop_body
      %s27 = ssub.s32 %s22, 1
      %s28 = ssub.s32 %s22, 2
      %s29 = sadd.s32 %s22, 1
      %s30 = ssub.s32 %s22, %s29
      %p31 = scmp.eq.s32.totalorder %s30, 0
      %s33 = sadd.s32 %s32, 1
      %s34 = scalar_select %p31, %s32, %s33
      %p37 = pneg %p31
      %p38 = scmp.eq.s32.totalorder %s22, 1
      %p39 = por %p37, %p38
      %p40 = scmp.ne.s32.totalorder %s32, %s35
      %p41 = scmp.eq.s32.totalorder %s22, 0
      %p42 = por %p40, %p41
      %p43 = scmp.ne.s32.totalorder %s32, %s35
      %p44 = scmp.eq.s32.totalorder %s27, 1
      %p45 = por %p43, %p44
      %p46 = scmp.ne.s32.totalorder %s35, %s36
      %p47 = scmp.eq.s32.totalorder %s27, 0
      %p48 = por %p46, %p47
      %p49 = scmp.ne.s32.totalorder %s35, %s36
      %p50 = scmp.eq.s32.totalorder %s28, 1
      %p51 = por %p49, %p50
      %p53 = scmp.ne.s32.totalorder %s36, %s52
      %p54 = scmp.eq.s32.totalorder %s28, 0
      %p55 = por %p53, %p54
      %s56 = ssub.s32 %s22, %s29
      %p57 = scmp.eq.s32.totalorder %s56, 0
      %s59 = sadd.s32 %s58, 1
      %s60 = scalar_select %p57, %s58, %s59
      %p63 = pneg %p57
      %p64 = scmp.eq.s32.totalorder %s22, 1
      %p65 = por %p63, %p64
      %p66 = scmp.ne.s32.totalorder %s58, %s61
      %p67 = scmp.eq.s32.totalorder %s22, 0
      %p68 = por %p66, %p67
      %p69 = scmp.ne.s32.totalorder %s58, %s61
      %p70 = scmp.eq.s32.totalorder %s27, 1
      %p71 = por %p69, %p70
      %p72 = scmp.ne.s32.totalorder %s61, %s62
      %p73 = scmp.eq.s32.totalorder %s27, 0
      %p74 = por %p72, %p73
      %p75 = scmp.ne.s32.totalorder %s61, %s62
      %p76 = scmp.eq.s32.totalorder %s28, 1
      %p77 = por %p75, %p76
      %p79 = scmp.ne.s32.totalorder %s62, %s78
      %p80 = scmp.eq.s32.totalorder %s28, 0
      %p81 = por %p79, %p80
      %s82 = ssub.s32 %s22, %s29
      %p83 = scmp.eq.s32.totalorder %s82, 0
      %s85 = sadd.s32 %s84, 1
      %s86 = scalar_select %p83, %s84, %s85
      %p89 = pneg %p83
      %p90 = scmp.eq.s32.totalorder %s22, 1
      %p91 = por %p89, %p90
      %p92 = scmp.ne.s32.totalorder %s84, %s87
      %p93 = scmp.eq.s32.totalorder %s22, 0
      %p94 = por %p92, %p93
      %p95 = scmp.ne.s32.totalorder %s84, %s87
      %p96 = scmp.eq.s32.totalorder %s27, 1
      %p97 = por %p95, %p96
      %p98 = scmp.ne.s32.totalorder %s87, %s88
      %p99 = scmp.eq.s32.totalorder %s27, 0
      %p100 = por %p98, %p99
      %p101 = scmp.ne.s32.totalorder %s87, %s88
      %p102 = scmp.eq.s32.totalorder %s28, 1
      %p103 = por %p101, %p102
      %p105 = scmp.ne.s32.totalorder %s88, %s104
      %p106 = scmp.eq.s32.totalorder %s28, 0
      %p107 = por %p105, %p106
      %s108 = ssub.s32 %s22, %s29
      %p109 = scmp.eq.s32.totalorder %s108, 0
      %s111 = sadd.s32 %s110, 1
      %s112 = scalar_select %p109, %s110, %s111
      %p115 = pneg %p109
      %p116 = scmp.eq.s32.totalorder %s22, 1
      %p117 = por %p115, %p116
      %p118 = scmp.ne.s32.totalorder %s110, %s113
      %p119 = scmp.eq.s32.totalorder %s22, 0
      %p120 = por %p118, %p119
      %p121 = scmp.ne.s32.totalorder %s110, %s113
      %p122 = scmp.eq.s32.totalorder %s27, 1
      %p123 = por %p121, %p122
      %p124 = scmp.ne.s32.totalorder %s113, %s114
      %p125 = scmp.eq.s32.totalorder %s27, 0
      %p126 = por %p124, %p125
      %p127 = scmp.ne.s32.totalorder %s113, %s114
      %p128 = scmp.eq.s32.totalorder %s28, 1
      %p129 = por %p127, %p128
      %p131 = scmp.ne.s32.totalorder %s114, %s130
      %p132 = scmp.eq.s32.totalorder %s28, 0
      %p133 = por %p131, %p132
      %p134 = scmp.le.s32.totalorder 1, %s22
      %p135 = scmp.lt.s32.totalorder %s22, 3
      %p136 = pnand %p134, %p135
      %p137 = pneg %p136
      // Predicated region
      $region9: #{tpu_custom_call.1} parent=5 // pred_check
        _
      $region10: #{tpu_custom_call.1} parent=5 // pred_check_branch
        %139 = sbr.rel (%p136) target = $region12
      $region11: #{tpu_custom_call.1} parent=5 // pred_region
        %s140 = ssub.s32 %s22, 1
      $region12: #{tpu_custom_call.1} parent=5 // pred_fallthru
        _
      %p141 = scmp.lt.s32.totalorder %s22, 2
      // Predicated region
      $region13: #{tpu_custom_call.1} parent=5 // pred_check
        %p142 = pneg %p141
      $region14: #{tpu_custom_call.1} parent=5 // pred_check_branch
        %144 = sbr.rel (%p142) target = $region16
      $region15: #{tpu_custom_call.1} parent=5 // pred_region
        // Predicated region
        $region17: #{tpu_custom_call.1} parent=15 // pred_check
          %p145 = pneg %p42
        $region18: #{tpu_custom_call.1} parent=15 // pred_check_branch
          %147 = sbr.rel (%p145) target = $region20
        $region19: #{tpu_custom_call.1} parent=15 // pred_region
          %s148 = sand.u32 %s32, 1
          %s149 = scalar_lea.sflag [#allocation3], %s148
          %s150 = sand.u32 %s32, 1
          %s151 = smul.addr %s150, 8
          %s152 = scalar_lea.vmem [#allocation2], %s151
          %s154 = ssub.s32 128, 128
          %155 = vsyncadd %s149, %s154
          %s156 = smul.addr %s22, 128
          %s157 = scalar_lea.hbm %s0, %s156
          %s159 = sshll.u32 %s152, 4
          %s160 = int_to_ptr.vmem [resolvable:$true] %s159
          %162 = dma.hbm_to_vmem [thread:$0]  %s157, 128, %s160, %s149
        $region20: #{tpu_custom_call.1} parent=15 // pred_fallthru
          _
        // Predicated region
        $region21: #{tpu_custom_call.1} parent=15 // pred_check
          %p163 = pneg %p68
        $region22: #{tpu_custom_call.1} parent=15 // pred_check_branch
          %165 = sbr.rel (%p163) target = $region24
        $region23: #{tpu_custom_call.1} parent=15 // pred_region
          %s166 = sand.u32 %s58, 1
          %s167 = scalar_lea.sflag [#allocation6], %s166
          %s168 = sand.u32 %s58, 1
          %s169 = smul.addr %s168, 8
          %s170 = scalar_lea.vmem [#allocation5], %s169
          %s172 = ssub.s32 128, 128
          %173 = vsyncadd %s167, %s172
          %s174 = smul.addr %s22, 128
          %s175 = scalar_lea.hbm %s1, %s174
          %s177 = sshll.u32 %s170, 4
          %s178 = int_to_ptr.vmem [resolvable:$true] %s177
          %180 = dma.hbm_to_vmem [thread:$0]  %s175, 128, %s178, %s167
        $region24: #{tpu_custom_call.1} parent=15 // pred_fallthru
          _
      $region16: #{tpu_custom_call.1} parent=5 // pred_fallthru
        _
      %p181 = scmp.le.s32.totalorder 1, %s22
      %p182 = scmp.lt.s32.totalorder %s22, 3
      %p183 = pnand %p181, %p182
      %p184 = pneg %p183
      // Predicated region
      $region25: #{tpu_custom_call.1} parent=5 // pred_check
        _
      $region26: #{tpu_custom_call.1} parent=5 // pred_check_branch
        %186 = sbr.rel (%p183) target = $region28
      $region27: #{tpu_custom_call.1} parent=5 // pred_region
        %s187 = ssub.s32 %s22, 1
        %s188 = sand.u32 %s35, 1
        %s189 = scalar_lea.sflag [#allocation3], %s188
        %s190 = sand.u32 %s35, 1
        %s191 = smul.addr %s190, 8
        %s192 = scalar_lea.vmem [#allocation2], %s191
        // Predicated region
        $region29: #{tpu_custom_call.1} parent=27 // pred_check
          %p193 = pneg %p48
        $region30: #{tpu_custom_call.1} parent=27 // pred_check_branch
          %195 = sbr.rel (%p193) target = $region32
        $region31: #{tpu_custom_call.1} parent=27 // pred_region
          %196 = dma.done %s189, 128
        $region32: #{tpu_custom_call.1} parent=27 // pred_fallthru
          _
        %s197 = sand.u32 %s61, 1
        %s198 = scalar_lea.sflag [#allocation6], %s197
        %s199 = sand.u32 %s61, 1
        %s200 = smul.addr %s199, 8
        %s201 = scalar_lea.vmem [#allocation5], %s200
        // Predicated region
        $region33: #{tpu_custom_call.1} parent=27 // pred_check
          %p202 = pneg %p74
        $region34: #{tpu_custom_call.1} parent=27 // pred_check_branch
          %204 = sbr.rel (%p202) target = $region36
        $region35: #{tpu_custom_call.1} parent=27 // pred_region
          %205 = dma.done %s198, 128
        $region36: #{tpu_custom_call.1} parent=27 // pred_fallthru
          _
        %s206 = sand.u32 %s35, 1
        %s207 = scalar_lea.sflag [#allocation3], %s206
        %s208 = sand.u32 %s35, 1
        %s209 = smul.addr %s208, 8
        %s210 = scalar_lea.vmem [#allocation2], %s209
        %p211 = pneg %p48
        %p212 = pneg %p45
        %s213 = sand.u32 %s61, 1
        %s214 = scalar_lea.sflag [#allocation6], %s213
        %s215 = sand.u32 %s61, 1
        %s216 = smul.addr %s215, 8
        %s217 = scalar_lea.vmem [#allocation5], %s216
        %p218 = pneg %p74
        %p219 = pneg %p71
        %p220 = pneg %p100
        %p221 = pneg %p97
        %s222 = sand.u32 %s87, 1
        %s223 = scalar_lea.sflag [#allocation4], %s222
        %s224 = sand.u32 %s87, 1
        %s225 = smul.addr %s224, 8
        %s226 = scalar_lea.vmem [#allocation7], %s225
        %p227 = pneg %p126
        %p228 = pneg %p123
        %s229 = sand.u32 %s113, 1
        %s230 = scalar_lea.sflag [#allocation9], %s229
        %s231 = sand.u32 %s113, 1
        %s232 = smul.addr %s231, 8
        %s233 = scalar_lea.vmem [#allocation8], %s232
        %v234 = vld [vmem:[%s192] sm:$0xff]
        %v235 = vld [vmem:[%s201] sm:$0xff]
        %v236 = vmul.f32 %v234, %v235
        %v237 = vadd.f32 %v236, 0.0
        %238 = vst [vmem:[%s226] sm:$0xff] %v237
        %v239 = vadd.f32 %v234, %v235
        %v240 = vadd.f32 %v239, 0.0
        %241 = vst [vmem:[%s233] sm:$0xff] %v240
        %s242 = sand.u32 %s87, 1
        %s243 = scalar_lea.sflag [#allocation4], %s242
        %s244 = sand.u32 %s87, 1
        %s245 = smul.addr %s244, 8
        %s246 = scalar_lea.vmem [#allocation7], %s245
        %s247 = sand.u32 %s113, 1
        %s248 = scalar_lea.sflag [#allocation9], %s247
        %s249 = sand.u32 %s113, 1
        %s250 = smul.addr %s249, 8
        %s251 = scalar_lea.vmem [#allocation8], %s250
        // Predicated region
        $region37: #{tpu_custom_call.1} parent=27 // pred_check
          %p252 = pneg %p97
        $region38: #{tpu_custom_call.1} parent=27 // pred_check_branch
          %254 = sbr.rel (%p252) target = $region40
        $region39: #{tpu_custom_call.1} parent=27 // pred_region
          %s256 = ssub.s32 128, 128
          %257 = vsyncadd %s243, %s256
          %s258 = smul.addr %s27, 128
          %s259 = scalar_lea.hbm %s2, %s258
          %s261 = sshll.u32 %s246, 4
          %s262 = int_to_ptr.vmem [resolvable:$true] %s261
          %264 = dma.vmem_to_hbm [thread:$0]  %s262, 128, %s259, %s243
        $region40: #{tpu_custom_call.1} parent=27 // pred_fallthru
          _
        // Predicated region
        $region41: #{tpu_custom_call.1} parent=27 // pred_check
          %p265 = pneg %p123
        $region42: #{tpu_custom_call.1} parent=27 // pred_check_branch
          %267 = sbr.rel (%p265) target = $region44
        $region43: #{tpu_custom_call.1} parent=27 // pred_region
          %s269 = ssub.s32 128, 128
          %270 = vsyncadd %s248, %s269
          %s271 = smul.addr %s27, 128
          %s272 = scalar_lea.hbm %s3, %s271
          %s274 = sshll.u32 %s251, 4
          %s275 = int_to_ptr.vmem [resolvable:$true] %s274
          %277 = dma.vmem_to_hbm [thread:$0]  %s275, 128, %s272, %s248
        $region44: #{tpu_custom_call.1} parent=27 // pred_fallthru
          _
      $region28: #{tpu_custom_call.1} parent=5 // pred_fallthru
        _
      %p278 = scmp.le.s32.totalorder 2, %s22
      // Predicated region
      $region45: #{tpu_custom_call.1} parent=5 // pred_check
        %p279 = pneg %p278
      $region46: #{tpu_custom_call.1} parent=5 // pred_check_branch
        %281 = sbr.rel (%p279) target = $region48
      $region47: #{tpu_custom_call.1} parent=5 // pred_region
        %s282 = ssub.s32 %s22, 2
        // Predicated region
        $region49: #{tpu_custom_call.1} parent=47 // pred_check
          %p283 = pneg %p103
        $region50: #{tpu_custom_call.1} parent=47 // pred_check_branch
          %285 = sbr.rel (%p283) target = $region52
        $region51: #{tpu_custom_call.1} parent=47 // pred_region
          %s286 = sand.u32 %s88, 1
          %s287 = scalar_lea.sflag [#allocation4], %s286
          %s288 = sand.u32 %s88, 1
          %s289 = smul.addr %s288, 8
          %s290 = scalar_lea.vmem [#allocation7], %s289
          %291 = dma.done %s287, 128
        $region52: #{tpu_custom_call.1} parent=47 // pred_fallthru
          _
        // Predicated region
        $region53: #{tpu_custom_call.1} parent=47 // pred_check
          %p292 = pneg %p129
        $region54: #{tpu_custom_call.1} parent=47 // pred_check_branch
          %294 = sbr.rel (%p292) target = $region56
        $region55: #{tpu_custom_call.1} parent=47 // pred_region
          %s295 = sand.u32 %s114, 1
          %s296 = scalar_lea.sflag [#allocation9], %s295
          %s297 = sand.u32 %s114, 1
          %s298 = smul.addr %s297, 8
          %s299 = scalar_lea.vmem [#allocation8], %s298
          %300 = dma.done %s296, 128
        $region56: #{tpu_custom_call.1} parent=47 // pred_fallthru
          _
      $region48: #{tpu_custom_call.1} parent=5 // pred_fallthru
        _
    $region6: #{tpu_custom_call.1} parent=1 // loop_footer
      %s26 = sadd.s32 1, %s22
    $region7: #{tpu_custom_call.1} parent=1 // loop_footer_branch
      %21 = sbr.rel target = $region3
    $region8: #{tpu_custom_call.1} parent=1 // loop_exit
      _
    %301 = vsyncpa [#allocation3], 1
    %s302 = scalar_lea.sflag [#allocation3], 1
    %303 = vsyncpa %s302, 1
    %304 = vsyncpa [#allocation6], 1
    %s305 = scalar_lea.sflag [#allocation6], 1
    %306 = vsyncpa %s305, 1
    %307 = vsyncpa [#allocation4], 1
    %s308 = scalar_lea.sflag [#allocation4], 1
    %309 = vsyncpa %s308, 1
    %310 = vsyncpa [#allocation9], 1
    %s311 = scalar_lea.sflag [#allocation9], 1
    %312 = vsyncpa %s311, 1

</llo_original>
